<compile_context>
chip_gen: v7x
topology: tpu7x:2x2x1
jax: 0.10.0
libtpu: 0.0.40
codegen_flags: <defaults>
</compile_context>

<pallas_src>
import functools

import jax
import jax.numpy as jnp
from jax.experimental import pallas as pl
from jax.experimental.pallas import tpu as pltpu


def _mlp_kernel(x_ref, wg_ref, wu_ref, wd_ref, o_ref, acc_ref, *, act_dtype):
    # x_ref  : (tile_s, H)        resident across the I-reduction axis (k)
    # wg_ref : (H, tile_i)        gate_proj^T tile k
    # wu_ref : (H, tile_i)        up_proj^T   tile k
    # wd_ref : (tile_i, H)        down_proj^T tile k
    # o_ref  : (tile_s, H)
    # acc_ref: (tile_s, H) f32    down-projection accumulator
    k = pl.program_id(1)

    @pl.when(k == 0)
    def _():
        acc_ref[...] = jnp.zeros_like(acc_ref)

    x = x_ref[...]

    # Two half-size MXU dots (instead of one fused (tile_s, 2*tile_i) result)
    # keep the live f32 MXU result small, and let the SiLU epilogue of `gate`
    # overlap with the `up` matmul.
    gate = jnp.dot(x, wg_ref[...], preferred_element_type=jnp.float32)
    g = gate.astype(act_dtype)
    g = g * jax.nn.sigmoid(g)                                   # SiLU

    up = jnp.dot(x, wu_ref[...], preferred_element_type=jnp.float32)
    h = (g * up.astype(act_dtype)).astype(wd_ref.dtype)

    acc_ref[...] += jnp.dot(h, wd_ref[...], preferred_element_type=jnp.float32)

    @pl.when(k == pl.num_programs(1) - 1)
    def _():
        o_ref[...] = acc_ref[...].astype(o_ref.dtype)


def _vmem_capacity_bytes():
    try:
        return int(pltpu.get_tpu_info().vmem_capacity_bytes)
    except Exception:
        return 128 * 1024 * 1024


def _weight_spec(block_shape, index_map, buffers):
    """Weight-stream BlockSpec; deeper pipelining when requested & supported."""
    if buffers > 2 and hasattr(pl, "Buffered"):
        try:
            return pl.BlockSpec(block_shape, index_map,
                                pipeline_mode=pl.Buffered(buffers))
        except TypeError:
            pass
    return pl.BlockSpec(block_shape, index_map)


def mllama_text_mlp(x, w_gate, w_up, w_down, *, tile_s=None, tile_i=None,
                    bf16_epilogue=None):
    """x: (S, H). w_gate/w_up: (H, I). w_down: (I, H). Returns (S, H).

    Weights are expected pre-transposed (in, out) = W^T of the PyTorch (out, in)
    layout — a one-time rearrangement done at weight-load time, not per call.

    tile_i: intermediate-dim streaming tile (multiple of 128 dividing I).
    tile_s: token tile (auto-shrunk & padded for small / ragged S).
    Defaults are picked from the physical VMEM size:
      64 MiB (v7x):   tile_s=512, tile_i=512
      128 MiB (v5e/v6e): tile_s=768, tile_i=1024
    bf16_epilogue: SiLU/multiplies in bf16 (default True for bf16 inputs; set
      False on v5e, which has no bf16 VPU/EUP).
    """
    S, H = x.shape
    Hg, I = w_gate.shape
    assert Hg == H and w_up.shape == (H, I) and w_down.shape == (I, H)

    itemsize = jnp.dtype(x.dtype).itemsize
    sub = max(8, 32 // itemsize)        # sublane packing: 8 (f32), 16 (bf16)

    vmem_cap = _vmem_capacity_bytes()
    small_vmem = vmem_cap < 100 * 1024 * 1024        # v7x-class (64 MiB / TC)

    # Per-generation default tiles (see docstring).
    if tile_s is None:
        tile_s = 512 if small_vmem else 768
    if tile_i is None:
        tile_i = 512 if small_vmem else 1024

    # Intermediate-dim tile: largest multiple of 128 <= tile_i that divides I.
    tile_i = min(tile_i, I)
    if I % 128 == 0:
        tile_i = max(128, (tile_i // 128) * 128)
        while I % tile_i:
            tile_i -= 128
    else:
        tile_i = I                       # ragged I: single reduction step
    n_k = I // tile_i

    # Token tile: shrink for small batches, keep it a multiple of the sublane
    # packing so the (8,128) block constraint holds.
    tile_s = max(sub, min(tile_s, pl.cdiv(S, sub) * sub))
    # On v7x only the token axis is "parallel"; for large S make sure there are
    # at least two token tiles so both TensorCores get work.
    if small_vmem and S >= 512:
        tile_s = min(tile_s, pl.cdiv(pl.cdiv(S, 2), sub) * sub)
    S_pad = pl.cdiv(S, tile_s) * tile_s
    if S_pad != S:
        x = jnp.pad(x, ((0, S_pad - S), (0, 0)))
    n_s = S_pad // tile_s

    # Decode / tiny batches on 128 MiB-VMEM parts are DMA-issue bound: use a
    # 3-deep weight pipeline there (still ~73 MiB of windows at Mllama shapes).
    buffers_w = 3 if (not small_vmem and S <= 32) else 2

    # SiLU epilogue precision.
    if bf16_epilogue is None:
        bf16_epilogue = (x.dtype == jnp.bfloat16)
    act_dtype = jnp.bfloat16 if bf16_epilogue else jnp.float32

    # VMEM budget: pipelined windows + accumulator + in-kernel temporaries.
    vmem_needed = (
        2 * tile_s * H * itemsize                  # x window (double-buffered)
        + 2 * buffers_w * H * tile_i * itemsize    # gate + up windows
        + buffers_w * tile_i * H * itemsize        # down window
        + 2 * tile_s * H * itemsize                # out window
        + tile_s * H * 4                           # f32 accumulator scratch
        + 2 * tile_s * tile_i * 4                  # gate / up f32 MXU results
        + tile_s * tile_i * itemsize               # h tile (weight dtype)
        + tile_s * H * 4                           # down-dot f32 result
    )
    vmem_limit = int(min(max(vmem_needed * 9 // 8, 32 * 1024 * 1024),
                         vmem_cap * 95 // 100))

    cost = pl.CostEstimate(
        flops=6 * S_pad * H * I,                 # 4*S*H*I (gate+up) + 2*S*I*H (down)
        transcendentals=S_pad * I,               # sigmoid
        bytes_accessed=(2 * S_pad * H + n_s * 3 * H * I) * itemsize,
    )

    out = pl.pallas_call(
        functools.partial(_mlp_kernel, act_dtype=act_dtype),
        out_shape=jax.ShapeDtypeStruct((S_pad, H), x.dtype),
        grid_spec=pltpu.PrefetchScalarGridSpec(
            num_scalar_prefetch=0,
            grid=(n_s, n_k),                                       # reduction last
            in_specs=[
                pl.BlockSpec((tile_s, H), lambda i, k: (i, 0)),    # x (resident over k)
                _weight_spec((H, tile_i), lambda i, k: (0, k), buffers_w),  # gate tile
                _weight_spec((H, tile_i), lambda i, k: (0, k), buffers_w),  # up tile
                _weight_spec((tile_i, H), lambda i, k: (k, 0), buffers_w),  # down tile
            ],
            out_specs=pl.BlockSpec((tile_s, H), lambda i, k: (i, 0)),
            scratch_shapes=[pltpu.VMEM((tile_s, H), jnp.float32)],
        ),
        compiler_params=pltpu.CompilerParams(
            dimension_semantics=("parallel", "arbitrary"),
            vmem_limit_bytes=vmem_limit,
        ),
        cost_estimate=cost,
    )(x, w_gate, w_up, w_down)

    return out[:S] if S_pad != S else out


def _reference(x, w_gate, w_up, w_down):
    hp = jax.lax.Precision.HIGHEST
    xf = x.astype(jnp.float32)
    gate = jnp.dot(xf, w_gate.astype(jnp.float32), precision=hp)
    up = jnp.dot(xf, w_up.astype(jnp.float32), precision=hp)
    h = jax.nn.silu(gate) * up
    return jnp.dot(h, w_down.astype(jnp.float32), precision=hp).astype(x.dtype)


if __name__ == "__main__":
    # Small, TPU-tile-aligned shapes consistent with the module's forward:
    # num_tokens=50 (ragged, exercises padding), hidden=256, intermediate=512.
    S, H, I = 50, 256, 512
    dtype = jnp.bfloat16

    key = jax.random.PRNGKey(0)
    kx, kg, ku, kd = jax.random.split(key, 4)
    x = jax.random.normal(kx, (S, H), dtype=jnp.float32).astype(dtype)
    # Weights stored as (in, out) = W^T of the PyTorch (out, in) layout.
    w_gate = (jax.random.normal(kg, (H, I), dtype=jnp.float32) * 0.02).astype(dtype)
    w_up = (jax.random.normal(ku, (H, I), dtype=jnp.float32) * 0.02).astype(dtype)
    w_down = (jax.random.normal(kd, (I, H), dtype=jnp.float32) * 0.02).astype(dtype)

    # tile_i=256 -> two reduction steps, exercising the f32 accumulator path.
    out = mllama_text_mlp(x, w_gate, w_up, w_down, tile_s=256, tile_i=256)
    out = jax.block_until_ready(out)

    ref = _reference(x, w_gate, w_up, w_down)
    assert out.shape == (S, H)
    assert jnp.allclose(out.astype(jnp.float32), ref.astype(jnp.float32),
                        atol=3e-3, rtol=2e-2), "mismatch vs reference"

    print("KERNEL_OK")
</pallas_src>

<mosaic_0001>
module attributes {stable_mosaic.version = 11 : i64} {
  func.func @_mlp_kernel(%arg0: i32, %arg1: i32, %arg2: memref<64x256xbf16, #tpu.memory_space<vmem>>, %arg3: memref<256x256xbf16, #tpu.memory_space<vmem>>, %arg4: memref<256x256xbf16, #tpu.memory_space<vmem>>, %arg5: memref<256x256xbf16, #tpu.memory_space<vmem>>, %arg6: memref<64x256xbf16, #tpu.memory_space<vmem>>, %arg7: memref<64x256xf32, #tpu.memory_space<vmem>>) attributes {dimension_semantics = [#tpu.dimension_semantics<parallel>, #tpu.dimension_semantics<arbitrary>], iteration_bounds = array<i64: 1, 2>, scalar_prefetch = 0 : i64, scratch_operands = 1 : i64, tpu.core_type = #tpu.core_type<tc>, window_params = [{transform_indices = @transform_0, window_bounds = array<i64: 64, 256>}, {transform_indices = @transform_1, window_bounds = array<i64: 256, 256>}, {transform_indices = @transform_2, window_bounds = array<i64: 256, 256>}, {transform_indices = @transform_3, window_bounds = array<i64: 256, 256>}, {transform_indices = @transform_4, window_bounds = array<i64: 64, 256>}]} {
    %c0_i32 = arith.constant 0 : i32
    %0 = arith.cmpi eq, %arg1, %c0_i32 : i32
    %1 = arith.extui %0 : i1 to i32
    %c0_i32_0 = arith.constant 0 : i32
    %2 = arith.cmpi ne, %1, %c0_i32_0 : i32
    scf.if %2 {
      %cst_16 = arith.constant 0.000000e+00 : f32
      %25 = vector.broadcast %cst_16 : f32 to vector<64x256xf32>
      %c0_17 = arith.constant 0 : index
      %c0_18 = arith.constant 0 : index
      %26 = vector.load %arg7[%c0_17, %c0_18] : memref<64x256xf32, #tpu.memory_space<vmem>>, vector<64x256xf32>
      tpu.vector_store %arg7[%c0_17, %c0_18], %25 {strides = array<i32>} : memref<64x256xf32, #tpu.memory_space<vmem>>, vector<64x256xf32>,
    } else {
    }
    %c0 = arith.constant 0 : index
    %c0_1 = arith.constant 0 : index
    %3 = vector.load %arg2[%c0, %c0_1] : memref<64x256xbf16, #tpu.memory_space<vmem>>, vector<64x256xbf16>
    %c0_2 = arith.constant 0 : index
    %c0_3 = arith.constant 0 : index
    %4 = vector.load %arg3[%c0_2, %c0_3] : memref<256x256xbf16, #tpu.memory_space<vmem>>, vector<256x256xbf16>
    %cst = arith.constant dense<0.000000e+00> : vector<64x256xf32>
    %5 = tpu.matmul %3, %4, %cst {dimension_numbers = #tpu.dot_dimension_numbers<[1], [0], [0], [1], [0, 0, 1, 1], [], []>} : vector<64x256xbf16>, vector<256x256xbf16>, vector<64x256xf32> -> vector<64x256xf32>
    %6 = arith.truncf %5 : vector<64x256xf32> to vector<64x256xbf16>
    %7 = arith.negf %6 : vector<64x256xbf16>
    %8 = math.exp %7 : vector<64x256xbf16>
    %cst_4 = arith.constant 1.000000e+00 : bf16
    %9 = vector.broadcast %cst_4 : bf16 to vector<64x256xbf16>
    %10 = arith.addf %9, %8 : vector<64x256xbf16>
    %11 = arith.divf %9, %10 : vector<64x256xbf16>
    %12 = arith.mulf %6, %11 : vector<64x256xbf16>
    %c0_5 = arith.constant 0 : index
    %c0_6 = arith.constant 0 : index
    %13 = vector.load %arg4[%c0_5, %c0_6] : memref<256x256xbf16, #tpu.memory_space<vmem>>, vector<256x256xbf16>
    %cst_7 = arith.constant dense<0.000000e+00> : vector<64x256xf32>
    %14 = tpu.matmul %3, %13, %cst_7 {dimension_numbers = #tpu.dot_dimension_numbers<[1], [0], [0], [1], [0, 0, 1, 1], [], []>} : vector<64x256xbf16>, vector<256x256xbf16>, vector<64x256xf32> -> vector<64x256xf32>
    %15 = arith.truncf %14 : vector<64x256xf32> to vector<64x256xbf16>
    %16 = arith.mulf %12, %15 : vector<64x256xbf16>
    %c0_8 = arith.constant 0 : index
    %c0_9 = arith.constant 0 : index
    %17 = vector.load %arg7[%c0_8, %c0_9] : memref<64x256xf32, #tpu.memory_space<vmem>>, vector<64x256xf32>
    %c0_10 = arith.constant 0 : index
    %c0_11 = arith.constant 0 : index
    %18 = vector.load %arg5[%c0_10, %c0_11] : memref<256x256xbf16, #tpu.memory_space<vmem>>, vector<256x256xbf16>
    %cst_12 = arith.constant dense<0.000000e+00> : vector<64x256xf32>
    %19 = tpu.matmul %16, %18, %cst_12 {dimension_numbers = #tpu.dot_dimension_numbers<[1], [0], [0], [1], [0, 0, 1, 1], [], []>} : vector<64x256xbf16>, vector<256x256xbf16>, vector<64x256xf32> -> vector<64x256xf32>
    %20 = arith.addf %17, %19 : vector<64x256xf32>
    %c0_13 = arith.constant 0 : index
    %c0_14 = arith.constant 0 : index
    %21 = vector.load %arg7[%c0_13, %c0_14] : memref<64x256xf32, #tpu.memory_space<vmem>>, vector<64x256xf32>
    tpu.vector_store %arg7[%c0_13, %c0_14], %20 {strides = array<i32>} : memref<64x256xf32, #tpu.memory_space<vmem>>, vector<64x256xf32>,
    %c1_i32 = arith.constant 1 : i32
    %22 = arith.cmpi eq, %arg1, %c1_i32 : i32
    %23 = arith.extui %22 : i1 to i32
    %c0_i32_15 = arith.constant 0 : i32
    %24 = arith.cmpi ne, %23, %c0_i32_15 : i32
    scf.if %24 {
      %c0_16 = arith.constant 0 : index
      %c0_17 = arith.constant 0 : index
      %25 = vector.load %arg7[%c0_16, %c0_17] : memref<64x256xf32, #tpu.memory_space<vmem>>, vector<64x256xf32>
      %26 = arith.truncf %25 : vector<64x256xf32> to vector<64x256xbf16>
      %c0_18 = arith.constant 0 : index
      %c0_19 = arith.constant 0 : index
      %27 = vector.load %arg6[%c0_18, %c0_19] : memref<64x256xbf16, #tpu.memory_space<vmem>>, vector<64x256xbf16>
      tpu.vector_store %arg6[%c0_18, %c0_19], %26 {strides = array<i32>} : memref<64x256xbf16, #tpu.memory_space<vmem>>, vector<64x256xbf16>,
    } else {
    }
    return
  }
  func.func @transform_0(%arg0: i32, %arg1: i32) -> (i32, i32) {
    %c0_i32 = arith.constant 0 : i32
    %c0_i32_0 = arith.constant 0 : i32
    return %arg0, %c0_i32 : i32, i32
  }
  func.func @transform_1(%arg0: i32, %arg1: i32) -> (i32, i32) {
    %c0_i32 = arith.constant 0 : i32
    %c0_i32_0 = arith.constant 0 : i32
    return %c0_i32, %arg1 : i32, i32
  }
  func.func @transform_2(%arg0: i32, %arg1: i32) -> (i32, i32) {
    %c0_i32 = arith.constant 0 : i32
    %c0_i32_0 = arith.constant 0 : i32
    return %c0_i32, %arg1 : i32, i32
  }
  func.func @transform_3(%arg0: i32, %arg1: i32) -> (i32, i32) {
    %c0_i32 = arith.constant 0 : i32
    %c0_i32_0 = arith.constant 0 : i32
    return %arg1, %c0_i32 : i32, i32
  }
  func.func @transform_4(%arg0: i32, %arg1: i32) -> (i32, i32) {
    %c0_i32 = arith.constant 0 : i32
    %c0_i32_0 = arith.constant 0 : i32
    return %arg0, %c0_i32 : i32, i32
  }
}

</mosaic_0001>

<llo_original>
// kernel: tpu_custom_call.1
$region0: #{tpu_custom_call.1}
  #allocation0 [shape = 'u32[]', space=smem, size = 0x4, offset = 0x4, fixed_abs, tag = 'smem constant byte address 0x4 - core index']
  #allocation1 [shape = 'u32[144,128]{1,0:T(1,128)}', space=vmem, size = 0x12000, scoped, tag = 'internal scratch']
  #allocation2 [shape = 'f32[64,256]{1,0:T(8,128)}', space=vmem, size = 0x10000, scoped, tag = 'scratch operand']
  %s0 = inlined_call_operand.hbm [shape: bf16[64,256], index: 0, kind: input, shape index: {}]
  %s1 = inlined_call_operand.hbm [shape: bf16[256,512], index: 1, kind: input, shape index: {}]
  %s2 = inlined_call_operand.hbm [shape: bf16[256,512], index: 2, kind: input, shape index: {}]
  %s3 = inlined_call_operand.hbm [shape: bf16[512,256], index: 3, kind: input, shape index: {}]
  %s4 = inlined_call_operand.hbm [shape: bf16[64,256], index: 4, kind: output, shape index: {}]
  %s5 = sld [smem:[#allocation0]]
  $region73: #{tpu_custom_call.1} parent=0
    _
  %s7 = ssub.s32 1, %s5
  %s8 = scalar_select 0, %s7, %s5
  $region1: #{tpu_custom_call.1} parent=0
    #allocation3 [shape = 'u8[32768]{0}', space=vmem, size = 0x8000, scoped, tag = 'input window, operand 0, single buffered']
    #allocation4 [shape = 's32[2]{0}', space=sflag, size = 0x8, scoped, tag = 'scoped memory for tpu_custom_call.1']
    #allocation5 [shape = 's32[2]{0}', space=sflag, size = 0x8, scoped, tag = 'scoped memory for tpu_custom_call.1']
    #allocation6 [shape = 'u8[262144]{0}', space=vmem, size = 0x40000, scoped, tag = 'input window, operand 1']
    #allocation7 [shape = 's32[2]{0}', space=sflag, size = 0x8, scoped, tag = 'scoped memory for tpu_custom_call.1']
    #allocation8 [shape = 'u8[262144]{0}', space=vmem, size = 0x40000, scoped, tag = 'input window, operand 2']
    #allocation9 [shape = 'u8[262144]{0}', space=vmem, size = 0x40000, scoped, tag = 'input window, operand 3']
    #allocation10 [shape = 's32[2]{0}', space=sflag, size = 0x8, scoped, tag = 'scoped memory for tpu_custom_call.1']
    #allocation11 [shape = 'u8[32768]{0}', space=vmem, size = 0x8000, scoped, tag = 'output window, operand 0, single buffered']
    %9 = vsyncpa [#allocation4], 0
    %10 = vsyncpa [#allocation7], 0
    %s11 = scalar_lea.sflag [#allocation7], 1
    %12 = vsyncpa %s11, 0
    %13 = vsyncpa [#allocation10], 0
    %s14 = scalar_lea.sflag [#allocation10], 1
    %15 = vsyncpa %s14, 0
    %16 = vsyncpa [#allocation5], 0
    loop: start=0, step=1, limit=4
    $region2: #{tpu_custom_call.1} parent=1 // loop_pre_header
      _
    $region3: #{tpu_custom_call.1} parent=1 // loop_header
      %s18 = sphi 0, %s22
      %p19 = scmp.ge.s32.totalorder %s18, 4
      %s25 = sphi 0, %s37
      %s26 = sphi 0, %s33
      %s27 = sphi 0, %s25
      %s28 = sphi 0, %s26
      %s29 = sphi 0, %s27
      %s30 = sphi 0, %s28
      %s40 = sphi 0, %s42
      %s43 = sphi 0, %s40
      %s44 = sphi 0, %s43
      %s60 = sphi 0, %s44
      %s66 = sphi 0, %s68
      %s69 = sphi 0, %s66
      %s70 = sphi 0, %s69
      %s86 = sphi 0, %s70
      %s92 = sphi 0, %s94
      %s95 = sphi 0, %s92
      %s96 = sphi 0, %s95
      %s112 = sphi 0, %s96
      %s118 = sphi 0, %s120
      %s121 = sphi 0, %s118
      %s122 = sphi 0, %s121
      %s138 = sphi 0, %s122
      %s144 = sphi 0, %s146
      %s147 = sphi 0, %s144
      %s148 = sphi 0, %s147
      %s164 = sphi 0, %s148
    $region4: #{tpu_custom_call.1} parent=1 // loop_header_branch
      %21 = sbr.rel (%p19) target = $region8
    $region5: #{tpu_custom_call.1} parent=1 // loop_body
      %s23 = ssub.s32 %s18, 1
      %s24 = ssub.s32 %s18, 2
      %s31 = sadd.s32 1, %s26
      %p32 = scmp.ge.s32.totalorder %s31, 2
      %s33 = scalar_select %p32, 0, %s31
      %s34 = sadd.s32 1, %s25
      %s35 = scalar_select %p32, %s34, %s25
      %p36 = scmp.ge.s32.totalorder %s35, 1
      %s37 = scalar_select %p36, 0, %s35
      %s38 = ssub.s32 %s25, %s37
      %p39 = scmp.eq.s32.totalorder %s38, 0
      %s41 = sadd.s32 %s40, 1
      %s42 = scalar_select %p39, %s40, %s41
      %p45 = pneg %p39
      %p46 = scmp.eq.s32.totalorder %s18, 1
      %p47 = por %p45, %p46
      %p48 = scmp.ne.s32.totalorder %s40, %s43
      %p49 = scmp.eq.s32.totalorder %s18, 0
      %p50 = por %p48, %p49
      %p51 = scmp.ne.s32.totalorder %s40, %s43
      %p52 = scmp.eq.s32.totalorder %s23, 1
      %p53 = por %p51, %p52
      %p54 = scmp.ne.s32.totalorder %s43, %s44
      %p55 = scmp.eq.s32.totalorder %s23, 0
      %p56 = por %p54, %p55
      %p57 = scmp.ne.s32.totalorder %s43, %s44
      %p58 = scmp.eq.s32.totalorder %s24, 1
      %p59 = por %p57, %p58
      %p61 = scmp.ne.s32.totalorder %s44, %s60
      %p62 = scmp.eq.s32.totalorder %s24, 0
      %p63 = por %p61, %p62
      %s64 = ssub.s32 %s26, %s33
      %p65 = scmp.eq.s32.totalorder %s64, 0
      %s67 = sadd.s32 %s66, 1
      %s68 = scalar_select %p65, %s66, %s67
      %p71 = pneg %p65
      %p72 = scmp.eq.s32.totalorder %s18, 1
      %p73 = por %p71, %p72
      %p74 = scmp.ne.s32.totalorder %s66, %s69
      %p75 = scmp.eq.s32.totalorder %s18, 0
      %p76 = por %p74, %p75
      %p77 = scmp.ne.s32.totalorder %s66, %s69
      %p78 = scmp.eq.s32.totalorder %s23, 1
      %p79 = por %p77, %p78
      %p80 = scmp.ne.s32.totalorder %s69, %s70
      %p81 = scmp.eq.s32.totalorder %s23, 0
      %p82 = por %p80, %p81
      %p83 = scmp.ne.s32.totalorder %s69, %s70
      %p84 = scmp.eq.s32.totalorder %s24, 1
      %p85 = por %p83, %p84
      %p87 = scmp.ne.s32.totalorder %s70, %s86
      %p88 = scmp.eq.s32.totalorder %s24, 0
      %p89 = por %p87, %p88
      %s90 = ssub.s32 %s26, %s33
      %p91 = scmp.eq.s32.totalorder %s90, 0
      %s93 = sadd.s32 %s92, 1
      %s94 = scalar_select %p91, %s92, %s93
      %p97 = pneg %p91
      %p98 = scmp.eq.s32.totalorder %s18, 1
      %p99 = por %p97, %p98
      %p100 = scmp.ne.s32.totalorder %s92, %s95
      %p101 = scmp.eq.s32.totalorder %s18, 0
      %p102 = por %p100, %p101
      %p103 = scmp.ne.s32.totalorder %s92, %s95
      %p104 = scmp.eq.s32.totalorder %s23, 1
      %p105 = por %p103, %p104
      %p106 = scmp.ne.s32.totalorder %s95, %s96
      %p107 = scmp.eq.s32.totalorder %s23, 0
      %p108 = por %p106, %p107
      %p109 = scmp.ne.s32.totalorder %s95, %s96
      %p110 = scmp.eq.s32.totalorder %s24, 1
      %p111 = por %p109, %p110
      %p113 = scmp.ne.s32.totalorder %s96, %s112
      %p114 = scmp.eq.s32.totalorder %s24, 0
      %p115 = por %p113, %p114
      %s116 = ssub.s32 %s26, %s33
      %p117 = scmp.eq.s32.totalorder %s116, 0
      %s119 = sadd.s32 %s118, 1
      %s120 = scalar_select %p117, %s118, %s119
      %p123 = pneg %p117
      %p124 = scmp.eq.s32.totalorder %s18, 1
      %p125 = por %p123, %p124
      %p126 = scmp.ne.s32.totalorder %s118, %s121
      %p127 = scmp.eq.s32.totalorder %s18, 0
      %p128 = por %p126, %p127
      %p129 = scmp.ne.s32.totalorder %s118, %s121
      %p130 = scmp.eq.s32.totalorder %s23, 1
      %p131 = por %p129, %p130
      %p132 = scmp.ne.s32.totalorder %s121, %s122
      %p133 = scmp.eq.s32.totalorder %s23, 0
      %p134 = por %p132, %p133
      %p135 = scmp.ne.s32.totalorder %s121, %s122
      %p136 = scmp.eq.s32.totalorder %s24, 1
      %p137 = por %p135, %p136
      %p139 = scmp.ne.s32.totalorder %s122, %s138
      %p140 = scmp.eq.s32.totalorder %s24, 0
      %p141 = por %p139, %p140
      %s142 = ssub.s32 %s25, %s37
      %p143 = scmp.eq.s32.totalorder %s142, 0
      %s145 = sadd.s32 %s144, 1
      %s146 = scalar_select %p143, %s144, %s145
      %p149 = pneg %p143
      %p150 = scmp.eq.s32.totalorder %s18, 1
      %p151 = por %p149, %p150
      %p152 = scmp.ne.s32.totalorder %s144, %s147
      %p153 = scmp.eq.s32.totalorder %s18, 0
      %p154 = por %p152, %p153
      %p155 = scmp.ne.s32.totalorder %s144, %s147
      %p156 = scmp.eq.s32.totalorder %s23, 1
      %p157 = por %p155, %p156
      %p158 = scmp.ne.s32.totalorder %s147, %s148
      %p159 = scmp.eq.s32.totalorder %s23, 0
      %p160 = por %p158, %p159
      %p161 = scmp.ne.s32.totalorder %s147, %s148
      %p162 = scmp.eq.s32.totalorder %s24, 1
      %p163 = por %p161, %p162
      %p165 = scmp.ne.s32.totalorder %s148, %s164
      %p166 = scmp.eq.s32.totalorder %s24, 0
      %p167 = por %p165, %p166
      %p168 = scmp.le.s32.totalorder 1, %s18
      %p169 = scmp.lt.s32.totalorder %s18, 3
      %p170 = pnand %p168, %p169
      %p171 = pneg %p170
      // Predicated region
      $region9: #{tpu_custom_call.1} parent=5 // pred_check
        _
      $region10: #{tpu_custom_call.1} parent=5 // pred_check_branch
        %173 = sbr.rel (%p170) target = $region12
      $region11: #{tpu_custom_call.1} parent=5 // pred_region
        %s174 = ssub.s32 %s18, 1
        // Predicated region
        $region13: #{tpu_custom_call.1} parent=11 // pred_check
          %p175 = pneg %p56
        $region14: #{tpu_custom_call.1} parent=11 // pred_check_branch
          %177 = sbr.rel (%p175) target = $region16
        $region15: #{tpu_custom_call.1} parent=11 // pred_region
          %s178 = smul.u32 8, %s27
          %s180 = ssub.s32 1024, 1024
          %181 = vsyncadd [#allocation4], %s180
          %s182 = smul.addr %s178, 2
          %s183 = smul.addr %s182, 64
          %s184 = scalar_lea.hbm %s0, %s183
          %s185 = sshll.u32 [#allocation3], 4
          %s186 = int_to_ptr.vmem [resolvable:$true] %s185
          %191 = dma.hbm_to_vmem [thread:$0]  %s184, 1024, %s186, [#allocation4], 128, 128, 8
        $region16: #{tpu_custom_call.1} parent=11 // pred_fallthru
          _
      $region12: #{tpu_custom_call.1} parent=5 // pred_fallthru
        _
      %p192 = scmp.lt.s32.totalorder %s18, 2
      // Predicated region
      $region17: #{tpu_custom_call.1} parent=5 // pred_check
        %p193 = pneg %p192
      $region18: #{tpu_custom_call.1} parent=5 // pred_check_branch
        %195 = sbr.rel (%p193) target = $region20
      $region19: #{tpu_custom_call.1} parent=5 // pred_region
        // Predicated region
        $region21: #{tpu_custom_call.1} parent=19 // pred_check
          %p196 = pneg %p76
        $region22: #{tpu_custom_call.1} parent=19 // pred_check_branch
          %198 = sbr.rel (%p196) target = $region24
        $region23: #{tpu_custom_call.1} parent=19 // pred_region
          %s199 = sand.u32 %s18, 1
          %s200 = scalar_lea.sflag [#allocation7], %s199
          %s201 = sand.u32 %s66, 1
          %s202 = smul.addr %s201, 256
          %s203 = scalar_lea.vmem [#allocation6], %s202
          %s204 = smul.u32 2, %s26
          %s206 = ssub.s32 4096, 4096
          %207 = vsyncadd %s200, %s206
          %s208 = smul.addr %s204, 64
          %s209 = scalar_lea.hbm %s1, %s208
          %s210 = sshll.u32 %s203, 4
          %s211 = int_to_ptr.vmem [resolvable:$true] %s210
          %216 = dma.hbm_to_vmem [thread:$0]  %s209, 4096, %s211, %s200, 256, 128, 8
        $region24: #{tpu_custom_call.1} parent=19 // pred_fallthru
          _
        // Predicated region
        $region25: #{tpu_custom_call.1} parent=19 // pred_check
          %p217 = pneg %p102
        $region26: #{tpu_custom_call.1} parent=19 // pred_check_branch
          %219 = sbr.rel (%p217) target = $region28
        $region27: #{tpu_custom_call.1} parent=19 // pred_region
          %s220 = sand.u32 %s18, 1
          %s221 = scalar_lea.sflag [#allocation7], %s220
          %s222 = sand.u32 %s92, 1
          %s223 = smul.addr %s222, 256
          %s224 = scalar_lea.vmem [#allocation8], %s223
          %s225 = smul.u32 2, %s26
          %s227 = ssub.s32 4096, 4096
          %228 = vsyncadd %s221, %s227
          %s229 = smul.addr %s225, 64
          %s230 = scalar_lea.hbm %s2, %s229
          %s231 = sshll.u32 %s224, 4
          %s232 = int_to_ptr.vmem [resolvable:$true] %s231
          %237 = dma.hbm_to_vmem [thread:$0]  %s230, 4096, %s232, %s221, 256, 128, 8
        $region28: #{tpu_custom_call.1} parent=19 // pred_fallthru
          _
        // Predicated region
        $region29: #{tpu_custom_call.1} parent=19 // pred_check
          %p238 = pneg %p128
        $region30: #{tpu_custom_call.1} parent=19 // pred_check_branch
          %240 = sbr.rel (%p238) target = $region32
        $region31: #{tpu_custom_call.1} parent=19 // pred_region
          %s241 = sand.u32 %s118, 1
          %s242 = scalar_lea.sflag [#allocation10], %s241
          %s243 = sand.u32 %s118, 1
          %s244 = smul.addr %s243, 256
          %s245 = scalar_lea.vmem [#allocation9], %s244
          %s246 = smul.u32 32, %s26
          %s248 = ssub.s32 4096, 4096
          %249 = vsyncadd %s242, %s248
          %s250 = smul.addr %s246, 2
          %s251 = smul.addr %s250, 64
          %s252 = scalar_lea.hbm %s3, %s251
          %s253 = sshll.u32 %s245, 4
          %s254 = int_to_ptr.vmem [resolvable:$true] %s253
          %259 = dma.hbm_to_vmem [thread:$0]  %s252, 4096, %s254, %s242, 128, 128, 8
        $region32: #{tpu_custom_call.1} parent=19 // pred_fallthru
          _
      $region20: #{tpu_custom_call.1} parent=5 // pred_fallthru
        _
      %p260 = scmp.le.s32.totalorder 1, %s18
      %p261 = scmp.lt.s32.totalorder %s18, 3
      %p262 = pnand %p260, %p261
      %p263 = pneg %p262
      // Predicated region
      $region33: #{tpu_custom_call.1} parent=5 // pred_check
        _
      $region34: #{tpu_custom_call.1} parent=5 // pred_check_branch
        %265 = sbr.rel (%p262) target = $region36
      $region35: #{tpu_custom_call.1} parent=5 // pred_region
        %s266 = ssub.s32 %s18, 1
        // Predicated region
        $region37: #{tpu_custom_call.1} parent=35 // pred_check
          %p267 = pneg %p56
        $region38: #{tpu_custom_call.1} parent=35 // pred_check_branch
          %269 = sbr.rel (%p267) target = $region40
        $region39: #{tpu_custom_call.1} parent=35 // pred_region
          %270 = dma.done [#allocation4], 1024
        $region40: #{tpu_custom_call.1} parent=35 // pred_fallthru
          _
        %s271 = sand.u32 %s23, 1
        %s272 = scalar_lea.sflag [#allocation7], %s271
        %s273 = sand.u32 %s69, 1
        %s274 = smul.addr %s273, 256
        %s275 = scalar_lea.vmem [#allocation6], %s274
        // Predicated region
        $region41: #{tpu_custom_call.1} parent=35 // pred_check
          %p276 = pneg %p82
        $region42: #{tpu_custom_call.1} parent=35 // pred_check_branch
          %278 = sbr.rel (%p276) target = $region44
        $region43: #{tpu_custom_call.1} parent=35 // pred_region
          %279 = dma.done %s272, 4096
        $region44: #{tpu_custom_call.1} parent=35 // pred_fallthru
          _
        %s280 = sand.u32 %s23, 1
        %s281 = scalar_lea.sflag [#allocation7], %s280
        %s282 = sand.u32 %s95, 1
        %s283 = smul.addr %s282, 256
        %s284 = scalar_lea.vmem [#allocation8], %s283
        // Predicated region
        $region45: #{tpu_custom_call.1} parent=35 // pred_check
          %p285 = pneg %p108
        $region46: #{tpu_custom_call.1} parent=35 // pred_check_branch
          %287 = sbr.rel (%p285) target = $region48
        $region47: #{tpu_custom_call.1} parent=35 // pred_region
          %288 = dma.done %s281, 4096
        $region48: #{tpu_custom_call.1} parent=35 // pred_fallthru
          _
        %s289 = sand.u32 %s121, 1
        %s290 = scalar_lea.sflag [#allocation10], %s289
        %s291 = sand.u32 %s121, 1
        %s292 = smul.addr %s291, 256
        %s293 = scalar_lea.vmem [#allocation9], %s292
        // Predicated region
        $region49: #{tpu_custom_call.1} parent=35 // pred_check
          %p294 = pneg %p134
        $region50: #{tpu_custom_call.1} parent=35 // pred_check_branch
          %296 = sbr.rel (%p294) target = $region52
        $region51: #{tpu_custom_call.1} parent=35 // pred_region
          %297 = dma.done %s290, 4096
        $region52: #{tpu_custom_call.1} parent=35 // pred_fallthru
          _
        %p298 = pneg %p56
        %p299 = pneg %p53
        %s300 = sand.u32 %s23, 1
        %s301 = scalar_lea.sflag [#allocation7], %s300
        %s302 = sand.u32 %s69, 1
        %s303 = smul.addr %s302, 256
        %s304 = scalar_lea.vmem [#allocation6], %s303
        %p305 = pneg %p82
        %p306 = pneg %p79
        %s307 = sand.u32 %s23, 1
        %s308 = scalar_lea.sflag [#allocation7], %s307
        %s309 = sand.u32 %s95, 1
        %s310 = smul.addr %s309, 256
        %s311 = scalar_lea.vmem [#allocation8], %s310
        %p312 = pneg %p108
        %p313 = pneg %p105
        %s314 = sand.u32 %s121, 1
        %s315 = scalar_lea.sflag [#allocation10], %s314
        %s316 = sand.u32 %s121, 1
        %s317 = smul.addr %s316, 256
        %s318 = scalar_lea.vmem [#allocation9], %s317
        %p319 = pneg %p134
        %p320 = pneg %p131
        %p321 = pneg %p160
        %p322 = pneg %p157
        %s323 = smul.u32 8, %s27
        %s324 = smul.u32 2, %s28
        %s325 = smul.u32 2, %s28
        %s326 = smul.u32 32, %s28
        %s327 = smul.u32 8, %s27
        %p329 = scmp.eq.s32.totalorder %s28, 0
        // Predicated region
        $region53: #{tpu_custom_call.1} parent=35 // pred_check
          %p330 = pneg %p329
        $region54: #{tpu_custom_call.1} parent=35 // pred_check_branch
          %332 = sbr.rel (%p330) target = $region56
        $region55: #{tpu_custom_call.1} parent=35 // pred_region
          %333 = vst [vmem:[#allocation2] sm:$0xff] 0.0
          %334 = vst [vmem:[#allocation2 + $0x8] sm:$0xff] 0.0
          %335 = vst [vmem:[#allocation2 + $0x10] sm:$0xff] 0.0
          %336 = vst [vmem:[#allocation2 + $0x18] sm:$0xff] 0.0
          %337 = vst [vmem:[#allocation2 + $0x20] sm:$0xff] 0.0
          %338 = vst [vmem:[#allocation2 + $0x28] sm:$0xff] 0.0
          %339 = vst [vmem:[#allocation2 + $0x30] sm:$0xff] 0.0
          %340 = vst [vmem:[#allocation2 + $0x38] sm:$0xff] 0.0
          %341 = vst [vmem:[#allocation2 + $0x40] sm:$0xff] 0.0
          %342 = vst [vmem:[#allocation2 + $0x48] sm:$0xff] 0.0
          %343 = vst [vmem:[#allocation2 + $0x50] sm:$0xff] 0.0
          %344 = vst [vmem:[#allocation2 + $0x58] sm:$0xff] 0.0
          %345 = vst [vmem:[#allocation2 + $0x60] sm:$0xff] 0.0
          %346 = vst [vmem:[#allocation2 + $0x68] sm:$0xff] 0.0
          %347 = vst [vmem:[#allocation2 + $0x70] sm:$0xff] 0.0
          %348 = vst [vmem:[#allocation2 + $0x78] sm:$0xff] 0.0
        $region56: #{tpu_custom_call.1} parent=35 // pred_fallthru
          _
        %v349 = vld [vmem:[#allocation3] sm:$0xff]
        %v350 = vld [vmem:[#allocation3 + $0x8] sm:$0xff]
        %v351 = vld [vmem:[#allocation3 + $0x10] sm:$0xff]
        %v352 = vld [vmem:[#allocation3 + $0x18] sm:$0xff]
        %v353 = vld [vmem:[#allocation3 + $0x20] sm:$0xff]
        %v354 = vld [vmem:[#allocation3 + $0x28] sm:$0xff]
        %v355 = vld [vmem:[#allocation3 + $0x30] sm:$0xff]
        %v356 = vld [vmem:[#allocation3 + $0x38] sm:$0xff]
        %v357 = vld [vmem:[%s275] sm:$0xff]
        %v358 = vld [vmem:[%s275 + $0x8] sm:$0xff]
        %v359 = vld [vmem:[%s275 + $0x10] sm:$0xff]
        %v360 = vld [vmem:[%s275 + $0x18] sm:$0xff]
        %v361 = vld [vmem:[%s275 + $0x20] sm:$0xff]
        %v362 = vld [vmem:[%s275 + $0x28] sm:$0xff]
        %v363 = vld [vmem:[%s275 + $0x30] sm:$0xff]
        %v364 = vld [vmem:[%s275 + $0x38] sm:$0xff]
        %v365 = vld [vmem:[%s275 + $0x40] sm:$0xff]
        %v366 = vld [vmem:[%s275 + $0x48] sm:$0xff]
        %v367 = vld [vmem:[%s275 + $0x50] sm:$0xff]
        %v368 = vld [vmem:[%s275 + $0x58] sm:$0xff]
        %v369 = vld [vmem:[%s275 + $0x60] sm:$0xff]
        %v370 = vld [vmem:[%s275 + $0x68] sm:$0xff]
        %v371 = vld [vmem:[%s275 + $0x70] sm:$0xff]
        %v372 = vld [vmem:[%s275 + $0x78] sm:$0xff]
        %v373 = vld [vmem:[%s275 + $0x80] sm:$0xff]
        %v374 = vld [vmem:[%s275 + $0x88] sm:$0xff]
        %v375 = vld [vmem:[%s275 + $0x90] sm:$0xff]
        %v376 = vld [vmem:[%s275 + $0x98] sm:$0xff]
        %v377 = vld [vmem:[%s275 + $0xa0] sm:$0xff]
        %v378 = vld [vmem:[%s275 + $0xa8] sm:$0xff]
        %v379 = vld [vmem:[%s275 + $0xb0] sm:$0xff]
        %v380 = vld [vmem:[%s275 + $0xb8] sm:$0xff]
        %v381 = vld [vmem:[%s275 + $0xc0] sm:$0xff]
        %v382 = vld [vmem:[%s275 + $0xc8] sm:$0xff]
        %v383 = vld [vmem:[%s275 + $0xd0] sm:$0xff]
        %v384 = vld [vmem:[%s275 + $0xd8] sm:$0xff]
        %v385 = vld [vmem:[%s275 + $0xe0] sm:$0xff]
        %v386 = vld [vmem:[%s275 + $0xe8] sm:$0xff]
        %v387 = vld [vmem:[%s275 + $0xf0] sm:$0xff]
        %v388 = vld [vmem:[%s275 + $0xf8] sm:$0xff]
        %v397 = vunpack.c.l.b16 %v349
        %v398 = vunpack.c.h.b16 %v349
        %v399 = vunpack.c.l.b16 %v350
        %v400 = vunpack.c.h.b16 %v350
        %v401 = vunpack.c.l.b16 %v351
        %v402 = vunpack.c.h.b16 %v351
        %v403 = vunpack.c.l.b16 %v352
        %v404 = vunpack.c.h.b16 %v352
        %v405 = vunpack.c.l.b16 %v353
        %v406 = vunpack.c.h.b16 %v353
        %v407 = vunpack.c.l.b16 %v354
        %v408 = vunpack.c.h.b16 %v354
        %v409 = vunpack.c.l.b16 %v355
        %v410 = vunpack.c.h.b16 %v355
        %v411 = vunpack.c.l.b16 %v356
        %v412 = vunpack.c.h.b16 %v356
        %v413 = vpack.c.b16 %v399, %v397
        %v414 = vpack.c.b16 %v400, %v398
        %v415 = vpack.c.b16 %v403, %v401
        %v416 = vpack.c.b16 %v404, %v402
        %v417 = vpack.c.b16 %v407, %v405
        %v418 = vpack.c.b16 %v408, %v406
        %v419 = vpack.c.b16 %v411, %v409
        %v420 = vpack.c.b16 %v412, %v410
        %v461 = vunpack.c.l.b16 %v357
        %v462 = vunpack.c.h.b16 %v357
        %v463 = vunpack.c.l.b16 %v358
        %v464 = vunpack.c.h.b16 %v358
        %v465 = vunpack.c.l.b16 %v359
        %v466 = vunpack.c.h.b16 %v359
        %v467 = vunpack.c.l.b16 %v360
        %v468 = vunpack.c.h.b16 %v360
        %v469 = vunpack.c.l.b16 %v361
        %v470 = vunpack.c.h.b16 %v361
        %v471 = vunpack.c.l.b16 %v362
        %v472 = vunpack.c.h.b16 %v362
        %v473 = vunpack.c.l.b16 %v363
        %v474 = vunpack.c.h.b16 %v363
        %v475 = vunpack.c.l.b16 %v364
        %v476 = vunpack.c.h.b16 %v364
        %v477 = vunpack.c.l.b16 %v365
        %v478 = vunpack.c.h.b16 %v365
        %v479 = vunpack.c.l.b16 %v366
        %v480 = vunpack.c.h.b16 %v366
        %v481 = vunpack.c.l.b16 %v367
        %v482 = vunpack.c.h.b16 %v367
        %v483 = vunpack.c.l.b16 %v368
        %v484 = vunpack.c.h.b16 %v368
        %v485 = vunpack.c.l.b16 %v369
        %v486 = vunpack.c.h.b16 %v369
        %v487 = vunpack.c.l.b16 %v370
        %v488 = vunpack.c.h.b16 %v370
        %v489 = vunpack.c.l.b16 %v371
        %v490 = vunpack.c.h.b16 %v371
        %v491 = vunpack.c.l.b16 %v372
        %v492 = vunpack.c.h.b16 %v372
        %v493 = vunpack.c.l.b16 %v373
        %v494 = vunpack.c.h.b16 %v373
        %v495 = vunpack.c.l.b16 %v374
        %v496 = vunpack.c.h.b16 %v374
        %v497 = vunpack.c.l.b16 %v375
        %v498 = vunpack.c.h.b16 %v375
        %v499 = vunpack.c.l.b16 %v376
        %v500 = vunpack.c.h.b16 %v376
        %v501 = vunpack.c.l.b16 %v377
        %v502 = vunpack.c.h.b16 %v377
        %v503 = vunpack.c.l.b16 %v378
        %v504 = vunpack.c.h.b16 %v378
        %v505 = vunpack.c.l.b16 %v379
        %v506 = vunpack.c.h.b16 %v379
        %v507 = vunpack.c.l.b16 %v380
        %v508 = vunpack.c.h.b16 %v380
        %v509 = vunpack.c.l.b16 %v381
        %v510 = vunpack.c.h.b16 %v381
        %v511 = vunpack.c.l.b16 %v382
        %v512 = vunpack.c.h.b16 %v382
        %v513 = vunpack.c.l.b16 %v383
        %v514 = vunpack.c.h.b16 %v383
        %v515 = vunpack.c.l.b16 %v384
        %v516 = vunpack.c.h.b16 %v384
        %v517 = vunpack.c.l.b16 %v385
        %v518 = vunpack.c.h.b16 %v385
        %v519 = vunpack.c.l.b16 %v386
        %v520 = vunpack.c.h.b16 %v386
        %v521 = vunpack.c.l.b16 %v387
        %v522 = vunpack.c.h.b16 %v387
        %v523 = vunpack.c.l.b16 %v388
        %v524 = vunpack.c.h.b16 %v388
        %v525 = vpack.c.b16 %v463, %v461
        %v526 = vpack.c.b16 %v464, %v462
        %v527 = vpack.c.b16 %v467, %v465
        %v528 = vpack.c.b16 %v468, %v466
        %v529 = vpack.c.b16 %v471, %v469
        %v530 = vpack.c.b16 %v472, %v470
        %v531 = vpack.c.b16 %v475, %v473
        %v532 = vpack.c.b16 %v476, %v474
        %v533 = vpack.c.b16 %v479, %v477
        %v534 = vpack.c.b16 %v480, %v478
        %v535 = vpack.c.b16 %v483, %v481
        %v536 = vpack.c.b16 %v484, %v482
        %v537 = vpack.c.b16 %v487, %v485
        %v538 = vpack.c.b16 %v488, %v486
        %v539 = vpack.c.b16 %v491, %v489
        %v540 = vpack.c.b16 %v492, %v490
        %v541 = vpack.c.b16 %v495, %v493
        %v542 = vpack.c.b16 %v496, %v494
        %v543 = vpack.c.b16 %v499, %v497
        %v544 = vpack.c.b16 %v500, %v498
        %v545 = vpack.c.b16 %v503, %v501
        %v546 = vpack.c.b16 %v504, %v502
        %v547 = vpack.c.b16 %v507, %v505
        %v548 = vpack.c.b16 %v508, %v506
        %v549 = vpack.c.b16 %v511, %v509
        %v550 = vpack.c.b16 %v512, %v510
        %v551 = vpack.c.b16 %v515, %v513
        %v552 = vpack.c.b16 %v516, %v514
        %v553 = vpack.c.b16 %v519, %v517
        %v554 = vpack.c.b16 %v520, %v518
        %v555 = vpack.c.b16 %v523, %v521
        %v556 = vpack.c.b16 %v524, %v522
        %589 = vmatprep.subr.bf16.mxu0 %v526
        %590 = vmatpush1.bf16.msra.mxu0 %v525
        %591 = vmatprep.subr.bf16.mxu0 %v528
        %592 = vmatpush1.bf16.msra.mxu0 %v527
        %593 = vmatprep.subr.bf16.mxu0 %v530
        %594 = vmatpush1.bf16.msra.mxu0 %v529
        %595 = vmatprep.subr.bf16.mxu0 %v532
        %596 = vmatpush1.bf16.msra.mxu0 %v531
        %597 = vmatprep.subr.bf16.mxu0 %v534
        %598 = vmatpush1.bf16.msra.mxu0 %v533
        %599 = vmatprep.subr.bf16.mxu0 %v536
        %600 = vmatpush1.bf16.msra.mxu0 %v535
        %601 = vmatprep.subr.bf16.mxu0 %v538
        %602 = vmatpush1.bf16.msra.mxu0 %v537
        %603 = vmatprep.subr.bf16.mxu0 %v540
        %604 = vmatpush1.bf16.msra.mxu0 %v539
        %605 = vmatprep.subr.bf16.mxu0 %v542
        %606 = vmatpush1.bf16.msra.mxu0 %v541
        %607 = vmatprep.subr.bf16.mxu0 %v544
        %608 = vmatpush1.bf16.msra.mxu0 %v543
        %609 = vmatprep.subr.bf16.mxu0 %v546
        %610 = vmatpush1.bf16.msra.mxu0 %v545
        %611 = vmatprep.subr.bf16.mxu0 %v548
        %612 = vmatpush1.bf16.msra.mxu0 %v547
        %613 = vmatprep.subr.bf16.mxu0 %v550
        %614 = vmatpush1.bf16.msra.mxu0 %v549
        %615 = vmatprep.subr.bf16.mxu0 %v552
        %616 = vmatpush1.bf16.msra.mxu0 %v551
        %617 = vmatprep.subr.bf16.mxu0 %v554
        %618 = vmatpush1.bf16.msra.mxu0 %v553
        %619 = vmatprep.subr.bf16.mxu0 %v556
        %620 = vmatpush1.bf16.msra.mxu0 %v555
        %621 = vmatprep.mubr.bf16.mxu0 %v414
        %622 = vmatmul.mubr.bf16.gmra.mrb[0].mxu0 %v413
        %v623 = vpop.f32.mrb[0].mxu0
        %v624 = vadd.f32 0.0, %v623
        %v625 = vpop.f32.mrb[0].mxu0
        %v626 = vadd.f32 0.0, %v625
        %v627 = vpop.f32.mrb[0].mxu0
        %v628 = vadd.f32 0.0, %v627
        %v629 = vpop.f32.mrb[0].mxu0
        %v630 = vadd.f32 0.0, %v629
        %631 = vmatprep.mubr.bf16.mxu0 %v416
        %632 = vmatmul.mubr.bf16.gmra.mrb[0].mxu0 %v415
        %v633 = vpop.f32.mrb[0].mxu0
        %v634 = vadd.f32 0.0, %v633
        %v635 = vpop.f32.mrb[0].mxu0
        %v636 = vadd.f32 0.0, %v635
        %v637 = vpop.f32.mrb[0].mxu0
        %v638 = vadd.f32 0.0, %v637
        %v639 = vpop.f32.mrb[0].mxu0
        %v640 = vadd.f32 0.0, %v639
        %641 = vmatprep.mubr.bf16.mxu0 %v418
        %642 = vmatmul.mubr.bf16.gmra.mrb[0].mxu0 %v417
        %v643 = vpop.f32.mrb[0].mxu0
        %v644 = vadd.f32 0.0, %v643
        %v645 = vpop.f32.mrb[0].mxu0
        %v646 = vadd.f32 0.0, %v645
        %v647 = vpop.f32.mrb[0].mxu0
        %v648 = vadd.f32 0.0, %v647
        %v649 = vpop.f32.mrb[0].mxu0
        %v650 = vadd.f32 0.0, %v649
        %651 = vmatprep.mubr.bf16.mxu0 %v420
        %652 = vmatmul.mubr.bf16.gmra.mrb[0].mxu0 %v419
        %v653 = vpop.f32.mrb[0].mxu0
        %v654 = vadd.f32 0.0, %v653
        %v655 = vpop.f32.mrb[0].mxu0
        %v656 = vadd.f32 0.0, %v655
        %v657 = vpop.f32.mrb[0].mxu0
        %v658 = vadd.f32 0.0, %v657
        %v659 = vpop.f32.mrb[0].mxu0
        %v660 = vadd.f32 0.0, %v659
        %661 = vdwg.mxu0
        %v662 = vpack.c.bf16 %v628, %v624
        %v663 = vpack.c.bf16 %v630, %v626
        %v664 = vpack.c.bf16 %v638, %v634
        %v665 = vpack.c.bf16 %v640, %v636
        %v666 = vpack.c.bf16 %v648, %v644
        %v667 = vpack.c.bf16 %v650, %v646
        %v668 = vpack.c.bf16 %v658, %v654
        %v669 = vpack.c.bf16 %v660, %v656
        %v670 = vxor.u32 %v662, 2147516416
        %v671 = vxor.u32 %v663, 2147516416
        %v672 = vxor.u32 %v664, 2147516416
        %v673 = vxor.u32 %v665, 2147516416
        %v674 = vxor.u32 %v666, 2147516416
        %v675 = vxor.u32 %v667, 2147516416
        %v676 = vxor.u32 %v668, 2147516416
        %v677 = vxor.u32 %v669, 2147516416
        %v679 = vmul.bf16 %v670, 1069105081
        %v680 = vpow.bf16.pop %v679
        %v682 = vmul.bf16 %v671, 1069105081
        %v683 = vpow.bf16.pop %v682
        %v685 = vmul.bf16 %v672, 1069105081
        %v686 = vpow.bf16.pop %v685
        %v688 = vmul.bf16 %v673, 1069105081
        %v689 = vpow.bf16.pop %v688
        %v691 = vmul.bf16 %v674, 1069105081
        %v692 = vpow.bf16.pop %v691
        %v694 = vmul.bf16 %v675, 1069105081
        %v695 = vpow.bf16.pop %v694
        %v697 = vmul.bf16 %v676, 1069105081
        %v698 = vpow.bf16.pop %v697
        %v700 = vmul.bf16 %v677, 1069105081
        %v701 = vpow.bf16.pop %v700
        %v702 = vadd.bf16 %v680, 1065369472
        %v703 = vadd.bf16 %v683, 1065369472
        %v704 = vadd.bf16 %v686, 1065369472
        %v705 = vadd.bf16 %v689, 1065369472
        %v706 = vadd.bf16 %v692, 1065369472
        %v707 = vadd.bf16 %v695, 1065369472
        %v708 = vadd.bf16 %v698, 1065369472
        %v709 = vadd.bf16 %v701, 1065369472
        %v710 = vrcp.bf16.pop %v702
        %v711 = vmul.bf16 1065369472, %v710
        %v712 = vrcp.bf16.pop %v703
        %v713 = vmul.bf16 1065369472, %v712
        %v714 = vrcp.bf16.pop %v704
        %v715 = vmul.bf16 1065369472, %v714
        %v716 = vrcp.bf16.pop %v705
        %v717 = vmul.bf16 1065369472, %v716
        %v718 = vrcp.bf16.pop %v706
        %v719 = vmul.bf16 1065369472, %v718
        %v720 = vrcp.bf16.pop %v707
        %v721 = vmul.bf16 1065369472, %v720
        %v722 = vrcp.bf16.pop %v708
        %v723 = vmul.bf16 1065369472, %v722
        %v724 = vrcp.bf16.pop %v709
        %v725 = vmul.bf16 1065369472, %v724
        %v726 = vmul.bf16 %v662, %v711
        %v727 = vmul.bf16 %v663, %v713
        %v728 = vmul.bf16 %v664, %v715
        %v729 = vmul.bf16 %v665, %v717
        %v730 = vmul.bf16 %v666, %v719
        %v731 = vmul.bf16 %v667, %v721
        %v732 = vmul.bf16 %v668, %v723
        %v733 = vmul.bf16 %v669, %v725
        %v734 = vld [vmem:[%s284] sm:$0xff]
        %v735 = vld [vmem:[%s284 + $0x8] sm:$0xff]
        %v736 = vld [vmem:[%s284 + $0x10] sm:$0xff]
        %v737 = vld [vmem:[%s284 + $0x18] sm:$0xff]
        %v738 = vld [vmem:[%s284 + $0x20] sm:$0xff]
        %v739 = vld [vmem:[%s284 + $0x28] sm:$0xff]
        %v740 = vld [vmem:[%s284 + $0x30] sm:$0xff]
        %v741 = vld [vmem:[%s284 + $0x38] sm:$0xff]
        %v742 = vld [vmem:[%s284 + $0x40] sm:$0xff]
        %v743 = vld [vmem:[%s284 + $0x48] sm:$0xff]
        %v744 = vld [vmem:[%s284 + $0x50] sm:$0xff]
        %v745 = vld [vmem:[%s284 + $0x58] sm:$0xff]
        %v746 = vld [vmem:[%s284 + $0x60] sm:$0xff]
        %v747 = vld [vmem:[%s284 + $0x68] sm:$0xff]
        %v748 = vld [vmem:[%s284 + $0x70] sm:$0xff]
        %v749 = vld [vmem:[%s284 + $0x78] sm:$0xff]
        %v750 = vld [vmem:[%s284 + $0x80] sm:$0xff]
        %v751 = vld [vmem:[%s284 + $0x88] sm:$0xff]
        %v752 = vld [vmem:[%s284 + $0x90] sm:$0xff]
        %v753 = vld [vmem:[%s284 + $0x98] sm:$0xff]
        %v754 = vld [vmem:[%s284 + $0xa0] sm:$0xff]
        %v755 = vld [vmem:[%s284 + $0xa8] sm:$0xff]
        %v756 = vld [vmem:[%s284 + $0xb0] sm:$0xff]
        %v757 = vld [vmem:[%s284 + $0xb8] sm:$0xff]
        %v758 = vld [vmem:[%s284 + $0xc0] sm:$0xff]
        %v759 = vld [vmem:[%s284 + $0xc8] sm:$0xff]
        %v760 = vld [vmem:[%s284 + $0xd0] sm:$0xff]
        %v761 = vld [vmem:[%s284 + $0xd8] sm:$0xff]
        %v762 = vld [vmem:[%s284 + $0xe0] sm:$0xff]
        %v763 = vld [vmem:[%s284 + $0xe8] sm:$0xff]
        %v764 = vld [vmem:[%s284 + $0xf0] sm:$0xff]
        %v765 = vld [vmem:[%s284 + $0xf8] sm:$0xff]
        %v798 = vunpack.c.l.b16 %v734
        %v799 = vunpack.c.h.b16 %v734
        %v800 = vunpack.c.l.b16 %v735
        %v801 = vunpack.c.h.b16 %v735
        %v802 = vunpack.c.l.b16 %v736
        %v803 = vunpack.c.h.b16 %v736
        %v804 = vunpack.c.l.b16 %v737
        %v805 = vunpack.c.h.b16 %v737
        %v806 = vunpack.c.l.b16 %v738
        %v807 = vunpack.c.h.b16 %v738
        %v808 = vunpack.c.l.b16 %v739
        %v809 = vunpack.c.h.b16 %v739
        %v810 = vunpack.c.l.b16 %v740
        %v811 = vunpack.c.h.b16 %v740
        %v812 = vunpack.c.l.b16 %v741
        %v813 = vunpack.c.h.b16 %v741
        %v814 = vunpack.c.l.b16 %v742
        %v815 = vunpack.c.h.b16 %v742
        %v816 = vunpack.c.l.b16 %v743
        %v817 = vunpack.c.h.b16 %v743
        %v818 = vunpack.c.l.b16 %v744
        %v819 = vunpack.c.h.b16 %v744
        %v820 = vunpack.c.l.b16 %v745
        %v821 = vunpack.c.h.b16 %v745
        %v822 = vunpack.c.l.b16 %v746
        %v823 = vunpack.c.h.b16 %v746
        %v824 = vunpack.c.l.b16 %v747
        %v825 = vunpack.c.h.b16 %v747
        %v826 = vunpack.c.l.b16 %v748
        %v827 = vunpack.c.h.b16 %v748
        %v828 = vunpack.c.l.b16 %v749
        %v829 = vunpack.c.h.b16 %v749
        %v830 = vunpack.c.l.b16 %v750
        %v831 = vunpack.c.h.b16 %v750
        %v832 = vunpack.c.l.b16 %v751
        %v833 = vunpack.c.h.b16 %v751
        %v834 = vunpack.c.l.b16 %v752
        %v835 = vunpack.c.h.b16 %v752
        %v836 = vunpack.c.l.b16 %v753
        %v837 = vunpack.c.h.b16 %v753
        %v838 = vunpack.c.l.b16 %v754
        %v839 = vunpack.c.h.b16 %v754
        %v840 = vunpack.c.l.b16 %v755
        %v841 = vunpack.c.h.b16 %v755
        %v842 = vunpack.c.l.b16 %v756
        %v843 = vunpack.c.h.b16 %v756
        %v844 = vunpack.c.l.b16 %v757
        %v845 = vunpack.c.h.b16 %v757
        %v846 = vunpack.c.l.b16 %v758
        %v847 = vunpack.c.h.b16 %v758
        %v848 = vunpack.c.l.b16 %v759
        %v849 = vunpack.c.h.b16 %v759
        %v850 = vunpack.c.l.b16 %v760
        %v851 = vunpack.c.h.b16 %v760
        %v852 = vunpack.c.l.b16 %v761
        %v853 = vunpack.c.h.b16 %v761
        %v854 = vunpack.c.l.b16 %v762
        %v855 = vunpack.c.h.b16 %v762
        %v856 = vunpack.c.l.b16 %v763
        %v857 = vunpack.c.h.b16 %v763
        %v858 = vunpack.c.l.b16 %v764
        %v859 = vunpack.c.h.b16 %v764
        %v860 = vunpack.c.l.b16 %v765
        %v861 = vunpack.c.h.b16 %v765
        %v862 = vpack.c.b16 %v800, %v798
        %v863 = vpack.c.b16 %v801, %v799
        %v864 = vpack.c.b16 %v804, %v802
        %v865 = vpack.c.b16 %v805, %v803
        %v866 = vpack.c.b16 %v808, %v806
        %v867 = vpack.c.b16 %v809, %v807
        %v868 = vpack.c.b16 %v812, %v810
        %v869 = vpack.c.b16 %v813, %v811
        %v870 = vpack.c.b16 %v816, %v814
        %v871 = vpack.c.b16 %v817, %v815
        %v872 = vpack.c.b16 %v820, %v818
        %v873 = vpack.c.b16 %v821, %v819
        %v874 = vpack.c.b16 %v824, %v822
        %v875 = vpack.c.b16 %v825, %v823
        %v876 = vpack.c.b16 %v828, %v826
        %v877 = vpack.c.b16 %v829, %v827
        %v878 = vpack.c.b16 %v832, %v830
        %v879 = vpack.c.b16 %v833, %v831
        %v880 = vpack.c.b16 %v836, %v834
        %v881 = vpack.c.b16 %v837, %v835
        %v882 = vpack.c.b16 %v840, %v838
        %v883 = vpack.c.b16 %v841, %v839
        %v884 = vpack.c.b16 %v844, %v842
        %v885 = vpack.c.b16 %v845, %v843
        %v886 = vpack.c.b16 %v848, %v846
        %v887 = vpack.c.b16 %v849, %v847
        %v888 = vpack.c.b16 %v852, %v850
        %v889 = vpack.c.b16 %v853, %v851
        %v890 = vpack.c.b16 %v856, %v854
        %v891 = vpack.c.b16 %v857, %v855
        %v892 = vpack.c.b16 %v860, %v858
        %v893 = vpack.c.b16 %v861, %v859
        %926 = vmatprep.subr.bf16.mxu0 %v863
        %927 = vmatpush1.bf16.msra.mxu0 %v862
        %928 = vmatprep.subr.bf16.mxu0 %v865
        %929 = vmatpush1.bf16.msra.mxu0 %v864
        %930 = vmatprep.subr.bf16.mxu0 %v867
        %931 = vmatpush1.bf16.msra.mxu0 %v866
        %932 = vmatprep.subr.bf16.mxu0 %v869
        %933 = vmatpush1.bf16.msra.mxu0 %v868
        %934 = vmatprep.subr.bf16.mxu0 %v871
        %935 = vmatpush1.bf16.msra.mxu0 %v870
        %936 = vmatprep.subr.bf16.mxu0 %v873
        %937 = vmatpush1.bf16.msra.mxu0 %v872
        %938 = vmatprep.subr.bf16.mxu0 %v875
        %939 = vmatpush1.bf16.msra.mxu0 %v874
        %940 = vmatprep.subr.bf16.mxu0 %v877
        %941 = vmatpush1.bf16.msra.mxu0 %v876
        %942 = vmatprep.subr.bf16.mxu0 %v879
        %943 = vmatpush1.bf16.msra.mxu0 %v878
        %944 = vmatprep.subr.bf16.mxu0 %v881
        %945 = vmatpush1.bf16.msra.mxu0 %v880
        %946 = vmatprep.subr.bf16.mxu0 %v883
        %947 = vmatpush1.bf16.msra.mxu0 %v882
        %948 = vmatprep.subr.bf16.mxu0 %v885
        %949 = vmatpush1.bf16.msra.mxu0 %v884
        %950 = vmatprep.subr.bf16.mxu0 %v887
        %951 = vmatpush1.bf16.msra.mxu0 %v886
        %952 = vmatprep.subr.bf16.mxu0 %v889
        %953 = vmatpush1.bf16.msra.mxu0 %v888
        %954 = vmatprep.subr.bf16.mxu0 %v891
        %955 = vmatpush1.bf16.msra.mxu0 %v890
        %956 = vmatprep.subr.bf16.mxu0 %v893
        %957 = vmatpush1.bf16.msra.mxu0 %v892
        %958 = vmatprep.mubr.bf16.mxu0 %v414
        %959 = vmatmul.mubr.bf16.gmra.mrb[0].mxu0 %v413
        %v960 = vpop.f32.mrb[0].mxu0
        %v961 = vadd.f32 0.0, %v960
        %v962 = vpop.f32.mrb[0].mxu0
        %v963 = vadd.f32 0.0, %v962
        %v964 = vpop.f32.mrb[0].mxu0
        %v965 = vadd.f32 0.0, %v964
        %v966 = vpop.f32.mrb[0].mxu0
        %v967 = vadd.f32 0.0, %v966
        %968 = vmatprep.mubr.bf16.mxu0 %v416
        %969 = vmatmul.mubr.bf16.gmra.mrb[0].mxu0 %v415
        %v970 = vpop.f32.mrb[0].mxu0
        %v971 = vadd.f32 0.0, %v970
        %v972 = vpop.f32.mrb[0].mxu0
        %v973 = vadd.f32 0.0, %v972
        %v974 = vpop.f32.mrb[0].mxu0
        %v975 = vadd.f32 0.0, %v974
        %v976 = vpop.f32.mrb[0].mxu0
        %v977 = vadd.f32 0.0, %v976
        %978 = vmatprep.mubr.bf16.mxu0 %v418
        %979 = vmatmul.mubr.bf16.gmra.mrb[0].mxu0 %v417
        %v980 = vpop.f32.mrb[0].mxu0
        %v981 = vadd.f32 0.0, %v980
        %v982 = vpop.f32.mrb[0].mxu0
        %v983 = vadd.f32 0.0, %v982
        %v984 = vpop.f32.mrb[0].mxu0
        %v985 = vadd.f32 0.0, %v984
        %v986 = vpop.f32.mrb[0].mxu0
        %v987 = vadd.f32 0.0, %v986
        %988 = vmatprep.mubr.bf16.mxu0 %v420
        %989 = vmatmul.mubr.bf16.gmra.mrb[0].mxu0 %v419
        %v990 = vpop.f32.mrb[0].mxu0
        %v991 = vadd.f32 0.0, %v990
        %v992 = vpop.f32.mrb[0].mxu0
        %v993 = vadd.f32 0.0, %v992
        %v994 = vpop.f32.mrb[0].mxu0
        %v995 = vadd.f32 0.0, %v994
        %v996 = vpop.f32.mrb[0].mxu0
        %v997 = vadd.f32 0.0, %v996
        %998 = vdwg.mxu0
        %v999 = vpack.c.bf16 %v965, %v961
        %v1000 = vpack.c.bf16 %v967, %v963
        %v1001 = vpack.c.bf16 %v975, %v971
        %v1002 = vpack.c.bf16 %v977, %v973
        %v1003 = vpack.c.bf16 %v985, %v981
        %v1004 = vpack.c.bf16 %v987, %v983
        %v1005 = vpack.c.bf16 %v995, %v991
        %v1006 = vpack.c.bf16 %v997, %v993
        %v1007 = vmul.bf16 %v726, %v999
        %v1008 = vmul.bf16 %v727, %v1000
        %v1009 = vmul.bf16 %v728, %v1001
        %v1010 = vmul.bf16 %v729, %v1002
        %v1011 = vmul.bf16 %v730, %v1003
        %v1012 = vmul.bf16 %v731, %v1004
        %v1013 = vmul.bf16 %v732, %v1005
        %v1014 = vmul.bf16 %v733, %v1006
        %v1015 = vld [vmem:[#allocation2] sm:$0xff]
        %v1016 = vld [vmem:[#allocation2 + $0x8] sm:$0xff]
        %v1017 = vld [vmem:[#allocation2 + $0x10] sm:$0xff]
        %v1018 = vld [vmem:[#allocation2 + $0x18] sm:$0xff]
        %v1019 = vld [vmem:[#allocation2 + $0x20] sm:$0xff]
        %v1020 = vld [vmem:[#allocation2 + $0x28] sm:$0xff]
        %v1021 = vld [vmem:[#allocation2 + $0x30] sm:$0xff]
        %v1022 = vld [vmem:[#allocation2 + $0x38] sm:$0xff]
        %v1023 = vld [vmem:[#allocation2 + $0x40] sm:$0xff]
        %v1024 = vld [vmem:[#allocation2 + $0x48] sm:$0xff]
        %v1025 = vld [vmem:[#allocation2 + $0x50] sm:$0xff]
        %v1026 = vld [vmem:[#allocation2 + $0x58] sm:$0xff]
        %v1027 = vld [vmem:[#allocation2 + $0x60] sm:$0xff]
        %v1028 = vld [vmem:[#allocation2 + $0x68] sm:$0xff]
        %v1029 = vld [vmem:[#allocation2 + $0x70] sm:$0xff]
        %v1030 = vld [vmem:[#allocation2 + $0x78] sm:$0xff]
        %v1031 = vld [vmem:[%s293] sm:$0xff]
        %v1032 = vld [vmem:[%s293 + $0x8] sm:$0xff]
        %v1033 = vld [vmem:[%s293 + $0x10] sm:$0xff]
        %v1034 = vld [vmem:[%s293 + $0x18] sm:$0xff]
        %v1035 = vld [vmem:[%s293 + $0x20] sm:$0xff]
        %v1036 = vld [vmem:[%s293 + $0x28] sm:$0xff]
        %v1037 = vld [vmem:[%s293 + $0x30] sm:$0xff]
        %v1038 = vld [vmem:[%s293 + $0x38] sm:$0xff]
        %v1039 = vld [vmem:[%s293 + $0x40] sm:$0xff]
        %v1040 = vld [vmem:[%s293 + $0x48] sm:$0xff]
        %v1041 = vld [vmem:[%s293 + $0x50] sm:$0xff]
        %v1042 = vld [vmem:[%s293 + $0x58] sm:$0xff]
        %v1043 = vld [vmem:[%s293 + $0x60] sm:$0xff]
        %v1044 = vld [vmem:[%s293 + $0x68] sm:$0xff]
        %v1045 = vld [vmem:[%s293 + $0x70] sm:$0xff]
        %v1046 = vld [vmem:[%s293 + $0x78] sm:$0xff]
        %v1047 = vld [vmem:[%s293 + $0x80] sm:$0xff]
        %v1048 = vld [vmem:[%s293 + $0x88] sm:$0xff]
        %v1049 = vld [vmem:[%s293 + $0x90] sm:$0xff]
        %v1050 = vld [vmem:[%s293 + $0x98] sm:$0xff]
        %v1051 = vld [vmem:[%s293 + $0xa0] sm:$0xff]
        %v1052 = vld [vmem:[%s293 + $0xa8] sm:$0xff]
        %v1053 = vld [vmem:[%s293 + $0xb0] sm:$0xff]
        %v1054 = vld [vmem:[%s293 + $0xb8] sm:$0xff]
        %v1055 = vld [vmem:[%s293 + $0xc0] sm:$0xff]
        %v1056 = vld [vmem:[%s293 + $0xc8] sm:$0xff]
        %v1057 = vld [vmem:[%s293 + $0xd0] sm:$0xff]
        %v1058 = vld [vmem:[%s293 + $0xd8] sm:$0xff]
        %v1059 = vld [vmem:[%s293 + $0xe0] sm:$0xff]
        %v1060 = vld [vmem:[%s293 + $0xe8] sm:$0xff]
        %v1061 = vld [vmem:[%s293 + $0xf0] sm:$0xff]
        %v1062 = vld [vmem:[%s293 + $0xf8] sm:$0xff]
        %v1095 = vunpack.c.l.b16 %v1031
        %v1096 = vunpack.c.h.b16 %v1031
        %v1097 = vunpack.c.l.b16 %v1032
        %v1098 = vunpack.c.h.b16 %v1032
        %v1099 = vunpack.c.l.b16 %v1033
        %v1100 = vunpack.c.h.b16 %v1033
        %v1101 = vunpack.c.l.b16 %v1034
        %v1102 = vunpack.c.h.b16 %v1034
        %v1103 = vunpack.c.l.b16 %v1035
        %v1104 = vunpack.c.h.b16 %v1035
        %v1105 = vunpack.c.l.b16 %v1036
        %v1106 = vunpack.c.h.b16 %v1036
        %v1107 = vunpack.c.l.b16 %v1037
        %v1108 = vunpack.c.h.b16 %v1037
        %v1109 = vunpack.c.l.b16 %v1038
        %v1110 = vunpack.c.h.b16 %v1038
        %v1111 = vunpack.c.l.b16 %v1039
        %v1112 = vunpack.c.h.b16 %v1039
        %v1113 = vunpack.c.l.b16 %v1040
        %v1114 = vunpack.c.h.b16 %v1040
        %v1115 = vunpack.c.l.b16 %v1041
        %v1116 = vunpack.c.h.b16 %v1041
        %v1117 = vunpack.c.l.b16 %v1042
        %v1118 = vunpack.c.h.b16 %v1042
        %v1119 = vunpack.c.l.b16 %v1043
        %v1120 = vunpack.c.h.b16 %v1043
        %v1121 = vunpack.c.l.b16 %v1044
        %v1122 = vunpack.c.h.b16 %v1044
        %v1123 = vunpack.c.l.b16 %v1045
        %v1124 = vunpack.c.h.b16 %v1045
        %v1125 = vunpack.c.l.b16 %v1046
        %v1126 = vunpack.c.h.b16 %v1046
        %v1127 = vunpack.c.l.b16 %v1047
        %v1128 = vunpack.c.h.b16 %v1047
        %v1129 = vunpack.c.l.b16 %v1048
        %v1130 = vunpack.c.h.b16 %v1048
        %v1131 = vunpack.c.l.b16 %v1049
        %v1132 = vunpack.c.h.b16 %v1049
        %v1133 = vunpack.c.l.b16 %v1050
        %v1134 = vunpack.c.h.b16 %v1050
        %v1135 = vunpack.c.l.b16 %v1051
        %v1136 = vunpack.c.h.b16 %v1051
        %v1137 = vunpack.c.l.b16 %v1052
        %v1138 = vunpack.c.h.b16 %v1052
        %v1139 = vunpack.c.l.b16 %v1053
        %v1140 = vunpack.c.h.b16 %v1053
        %v1141 = vunpack.c.l.b16 %v1054
        %v1142 = vunpack.c.h.b16 %v1054
        %v1143 = vunpack.c.l.b16 %v1055
        %v1144 = vunpack.c.h.b16 %v1055
        %v1145 = vunpack.c.l.b16 %v1056
        %v1146 = vunpack.c.h.b16 %v1056
        %v1147 = vunpack.c.l.b16 %v1057
        %v1148 = vunpack.c.h.b16 %v1057
        %v1149 = vunpack.c.l.b16 %v1058
        %v1150 = vunpack.c.h.b16 %v1058
        %v1151 = vunpack.c.l.b16 %v1059
        %v1152 = vunpack.c.h.b16 %v1059
        %v1153 = vunpack.c.l.b16 %v1060
        %v1154 = vunpack.c.h.b16 %v1060
        %v1155 = vunpack.c.l.b16 %v1061
        %v1156 = vunpack.c.h.b16 %v1061
        %v1157 = vunpack.c.l.b16 %v1062
        %v1158 = vunpack.c.h.b16 %v1062
        %v1159 = vpack.c.b16 %v1097, %v1095
        %v1160 = vpack.c.b16 %v1098, %v1096
        %v1161 = vpack.c.b16 %v1101, %v1099
        %v1162 = vpack.c.b16 %v1102, %v1100
        %v1163 = vpack.c.b16 %v1105, %v1103
        %v1164 = vpack.c.b16 %v1106, %v1104
        %v1165 = vpack.c.b16 %v1109, %v1107
        %v1166 = vpack.c.b16 %v1110, %v1108
        %v1167 = vpack.c.b16 %v1113, %v1111
        %v1168 = vpack.c.b16 %v1114, %v1112
        %v1169 = vpack.c.b16 %v1117, %v1115
        %v1170 = vpack.c.b16 %v1118, %v1116
        %v1171 = vpack.c.b16 %v1121, %v1119
        %v1172 = vpack.c.b16 %v1122, %v1120
        %v1173 = vpack.c.b16 %v1125, %v1123
        %v1174 = vpack.c.b16 %v1126, %v1124
        %v1175 = vpack.c.b16 %v1129, %v1127
        %v1176 = vpack.c.b16 %v1130, %v1128
        %v1177 = vpack.c.b16 %v1133, %v1131
        %v1178 = vpack.c.b16 %v1134, %v1132
        %v1179 = vpack.c.b16 %v1137, %v1135
        %v1180 = vpack.c.b16 %v1138, %v1136
        %v1181 = vpack.c.b16 %v1141, %v1139
        %v1182 = vpack.c.b16 %v1142, %v1140
        %v1183 = vpack.c.b16 %v1145, %v1143
        %v1184 = vpack.c.b16 %v1146, %v1144
        %v1185 = vpack.c.b16 %v1149, %v1147
        %v1186 = vpack.c.b16 %v1150, %v1148
        %v1187 = vpack.c.b16 %v1153, %v1151
        %v1188 = vpack.c.b16 %v1154, %v1152
        %v1189 = vpack.c.b16 %v1157, %v1155
        %v1190 = vpack.c.b16 %v1158, %v1156
        %1223 = vmatprep.subr.bf16.mxu0 %v1160
        %1224 = vmatpush1.bf16.msra.mxu0 %v1159
        %1225 = vmatprep.subr.bf16.mxu0 %v1162
        %1226 = vmatpush1.bf16.msra.mxu0 %v1161
        %1227 = vmatprep.subr.bf16.mxu0 %v1164
        %1228 = vmatpush1.bf16.msra.mxu0 %v1163
        %1229 = vmatprep.subr.bf16.mxu0 %v1166
        %1230 = vmatpush1.bf16.msra.mxu0 %v1165
        %1231 = vmatprep.subr.bf16.mxu0 %v1168
        %1232 = vmatpush1.bf16.msra.mxu0 %v1167
        %1233 = vmatprep.subr.bf16.mxu0 %v1170
        %1234 = vmatpush1.bf16.msra.mxu0 %v1169
        %1235 = vmatprep.subr.bf16.mxu0 %v1172
        %1236 = vmatpush1.bf16.msra.mxu0 %v1171
        %1237 = vmatprep.subr.bf16.mxu0 %v1174
        %1238 = vmatpush1.bf16.msra.mxu0 %v1173
        %1239 = vmatprep.subr.bf16.mxu0 %v1176
        %1240 = vmatpush1.bf16.msra.mxu0 %v1175
        %1241 = vmatprep.subr.bf16.mxu0 %v1178
        %1242 = vmatpush1.bf16.msra.mxu0 %v1177
        %1243 = vmatprep.subr.bf16.mxu0 %v1180
        %1244 = vmatpush1.bf16.msra.mxu0 %v1179
        %1245 = vmatprep.subr.bf16.mxu0 %v1182
        %1246 = vmatpush1.bf16.msra.mxu0 %v1181
        %1247 = vmatprep.subr.bf16.mxu0 %v1184
        %1248 = vmatpush1.bf16.msra.mxu0 %v1183
        %1249 = vmatprep.subr.bf16.mxu0 %v1186
        %1250 = vmatpush1.bf16.msra.mxu0 %v1185
        %1251 = vmatprep.subr.bf16.mxu0 %v1188
        %1252 = vmatpush1.bf16.msra.mxu0 %v1187
        %1253 = vmatprep.subr.bf16.mxu0 %v1190
        %1254 = vmatpush1.bf16.msra.mxu0 %v1189
        %1255 = vmatprep.mubr.bf16.mxu0 %v1008
        %1256 = vmatmul.mubr.bf16.gmra.mrb[0].mxu0 %v1007
        %v1257 = vpop.f32.mrb[0].mxu0
        %v1258 = vadd.f32 0.0, %v1257
        %v1259 = vpop.f32.mrb[0].mxu0
        %v1260 = vadd.f32 0.0, %v1259
        %v1261 = vpop.f32.mrb[0].mxu0
        %v1262 = vadd.f32 0.0, %v1261
        %v1263 = vpop.f32.mrb[0].mxu0
        %v1264 = vadd.f32 0.0, %v1263
        %1265 = vmatprep.mubr.bf16.mxu0 %v1010
        %1266 = vmatmul.mubr.bf16.gmra.mrb[0].mxu0 %v1009
        %v1267 = vpop.f32.mrb[0].mxu0
        %v1268 = vadd.f32 0.0, %v1267
        %v1269 = vpop.f32.mrb[0].mxu0
        %v1270 = vadd.f32 0.0, %v1269
        %v1271 = vpop.f32.mrb[0].mxu0
        %v1272 = vadd.f32 0.0, %v1271
        %v1273 = vpop.f32.mrb[0].mxu0
        %v1274 = vadd.f32 0.0, %v1273
        %1275 = vmatprep.mubr.bf16.mxu0 %v1012
        %1276 = vmatmul.mubr.bf16.gmra.mrb[0].mxu0 %v1011
        %v1277 = vpop.f32.mrb[0].mxu0
        %v1278 = vadd.f32 0.0, %v1277
        %v1279 = vpop.f32.mrb[0].mxu0
        %v1280 = vadd.f32 0.0, %v1279
        %v1281 = vpop.f32.mrb[0].mxu0
        %v1282 = vadd.f32 0.0, %v1281
        %v1283 = vpop.f32.mrb[0].mxu0
        %v1284 = vadd.f32 0.0, %v1283
        %1285 = vmatprep.mubr.bf16.mxu0 %v1014
        %1286 = vmatmul.mubr.bf16.gmra.mrb[0].mxu0 %v1013
        %v1287 = vpop.f32.mrb[0].mxu0
        %v1288 = vadd.f32 0.0, %v1287
        %v1289 = vpop.f32.mrb[0].mxu0
        %v1290 = vadd.f32 0.0, %v1289
        %v1291 = vpop.f32.mrb[0].mxu0
        %v1292 = vadd.f32 0.0, %v1291
        %v1293 = vpop.f32.mrb[0].mxu0
        %v1294 = vadd.f32 0.0, %v1293
        %1295 = vdwg.mxu0
        %v1296 = vadd.f32 %v1015, %v1258
        %v1297 = vadd.f32 %v1016, %v1260
        %v1298 = vadd.f32 %v1017, %v1262
        %v1299 = vadd.f32 %v1018, %v1264
        %v1300 = vadd.f32 %v1019, %v1268
        %v1301 = vadd.f32 %v1020, %v1270
        %v1302 = vadd.f32 %v1021, %v1272
        %v1303 = vadd.f32 %v1022, %v1274
        %v1304 = vadd.f32 %v1023, %v1278
        %v1305 = vadd.f32 %v1024, %v1280
        %v1306 = vadd.f32 %v1025, %v1282
        %v1307 = vadd.f32 %v1026, %v1284
        %v1308 = vadd.f32 %v1027, %v1288
        %v1309 = vadd.f32 %v1028, %v1290
        %v1310 = vadd.f32 %v1029, %v1292
        %v1311 = vadd.f32 %v1030, %v1294
        %1312 = vst [vmem:[#allocation2] sm:$0xff] %v1296
        %1313 = vst [vmem:[#allocation2 + $0x8] sm:$0xff] %v1297
        %1314 = vst [vmem:[#allocation2 + $0x10] sm:$0xff] %v1298
        %1315 = vst [vmem:[#allocation2 + $0x18] sm:$0xff] %v1299
        %1316 = vst [vmem:[#allocation2 + $0x20] sm:$0xff] %v1300
        %1317 = vst [vmem:[#allocation2 + $0x28] sm:$0xff] %v1301
        %1318 = vst [vmem:[#allocation2 + $0x30] sm:$0xff] %v1302
        %1319 = vst [vmem:[#allocation2 + $0x38] sm:$0xff] %v1303
        %1320 = vst [vmem:[#allocation2 + $0x40] sm:$0xff] %v1304
        %1321 = vst [vmem:[#allocation2 + $0x48] sm:$0xff] %v1305
        %1322 = vst [vmem:[#allocation2 + $0x50] sm:$0xff] %v1306
        %1323 = vst [vmem:[#allocation2 + $0x58] sm:$0xff] %v1307
        %1324 = vst [vmem:[#allocation2 + $0x60] sm:$0xff] %v1308
        %1325 = vst [vmem:[#allocation2 + $0x68] sm:$0xff] %v1309
        %1326 = vst [vmem:[#allocation2 + $0x70] sm:$0xff] %v1310
        %1327 = vst [vmem:[#allocation2 + $0x78] sm:$0xff] %v1311
        %p1328 = scmp.eq.s32.totalorder %s28, 1
        // Predicated region
        $region57: #{tpu_custom_call.1} parent=35 // pred_check
          %p1329 = pneg %p1328
        $region58: #{tpu_custom_call.1} parent=35 // pred_check_branch
          %1331 = sbr.rel (%p1329) target = $region60
        $region59: #{tpu_custom_call.1} parent=35 // pred_region
          %v1332 = vld [vmem:[#allocation2] sm:$0xff]
          %v1333 = vld [vmem:[#allocation2 + $0x8] sm:$0xff]
          %v1334 = vld [vmem:[#allocation2 + $0x10] sm:$0xff]
          %v1335 = vld [vmem:[#allocation2 + $0x18] sm:$0xff]
          %v1336 = vld [vmem:[#allocation2 + $0x20] sm:$0xff]
          %v1337 = vld [vmem:[#allocation2 + $0x28] sm:$0xff]
          %v1338 = vld [vmem:[#allocation2 + $0x30] sm:$0xff]
          %v1339 = vld [vmem:[#allocation2 + $0x38] sm:$0xff]
          %v1340 = vld [vmem:[#allocation2 + $0x40] sm:$0xff]
          %v1341 = vld [vmem:[#allocation2 + $0x48] sm:$0xff]
          %v1342 = vld [vmem:[#allocation2 + $0x50] sm:$0xff]
          %v1343 = vld [vmem:[#allocation2 + $0x58] sm:$0xff]
          %v1344 = vld [vmem:[#allocation2 + $0x60] sm:$0xff]
          %v1345 = vld [vmem:[#allocation2 + $0x68] sm:$0xff]
          %v1346 = vld [vmem:[#allocation2 + $0x70] sm:$0xff]
          %v1347 = vld [vmem:[#allocation2 + $0x78] sm:$0xff]
          %v1348 = vpack.c.bf16 %v1334, %v1332
          %v1349 = vpack.c.bf16 %v1335, %v1333
          %v1350 = vpack.c.bf16 %v1338, %v1336
          %v1351 = vpack.c.bf16 %v1339, %v1337
          %v1352 = vpack.c.bf16 %v1342, %v1340
          %v1353 = vpack.c.bf16 %v1343, %v1341
          %v1354 = vpack.c.bf16 %v1346, %v1344
          %v1355 = vpack.c.bf16 %v1347, %v1345
          %v1364 = vunpack.c.l.b16 %v1348
          %v1365 = vunpack.c.l.b16 %v1349
          %v1366 = vunpack.c.h.b16 %v1348
          %v1367 = vunpack.c.h.b16 %v1349
          %v1368 = vunpack.c.l.b16 %v1350
          %v1369 = vunpack.c.l.b16 %v1351
          %v1370 = vunpack.c.h.b16 %v1350
          %v1371 = vunpack.c.h.b16 %v1351
          %v1372 = vunpack.c.l.b16 %v1352
          %v1373 = vunpack.c.l.b16 %v1353
          %v1374 = vunpack.c.h.b16 %v1352
          %v1375 = vunpack.c.h.b16 %v1353
          %v1376 = vunpack.c.l.b16 %v1354
          %v1377 = vunpack.c.l.b16 %v1355
          %v1378 = vunpack.c.h.b16 %v1354
          %v1379 = vunpack.c.h.b16 %v1355
          %v1380 = vpack.c.b16 %v1365, %v1364
          %v1381 = vpack.c.b16 %v1367, %v1366
          %v1382 = vpack.c.b16 %v1369, %v1368
          %v1383 = vpack.c.b16 %v1371, %v1370
          %v1384 = vpack.c.b16 %v1373, %v1372
          %v1385 = vpack.c.b16 %v1375, %v1374
          %v1386 = vpack.c.b16 %v1377, %v1376
          %v1387 = vpack.c.b16 %v1379, %v1378
          %1396 = vst [vmem:[#allocation11] sm:$0xff] %v1380
          %1397 = vst [vmem:[#allocation11 + $0x8] sm:$0xff] %v1381
          %1398 = vst [vmem:[#allocation11 + $0x10] sm:$0xff] %v1382
          %1399 = vst [vmem:[#allocation11 + $0x18] sm:$0xff] %v1383
          %1400 = vst [vmem:[#allocation11 + $0x20] sm:$0xff] %v1384
          %1401 = vst [vmem:[#allocation11 + $0x28] sm:$0xff] %v1385
          %1402 = vst [vmem:[#allocation11 + $0x30] sm:$0xff] %v1386
          %1403 = vst [vmem:[#allocation11 + $0x38] sm:$0xff] %v1387
        $region60: #{tpu_custom_call.1} parent=35 // pred_fallthru
          _
        // Predicated region
        $region61: #{tpu_custom_call.1} parent=35 // pred_check
          %p1404 = pneg %p157
        $region62: #{tpu_custom_call.1} parent=35 // pred_check_branch
          %1406 = sbr.rel (%p1404) target = $region64
        $region63: #{tpu_custom_call.1} parent=35 // pred_region
          %s1407 = smul.u32 8, %s27
          %s1409 = ssub.s32 1024, 1024
          %1410 = vsyncadd [#allocation5], %s1409
          %s1411 = smul.addr %s1407, 2
          %s1412 = smul.addr %s1411, 64
          %s1413 = scalar_lea.hbm %s4, %s1412
          %s1414 = sshll.u32 [#allocation11], 4
          %s1415 = int_to_ptr.vmem [resolvable:$true] %s1414
          %1420 = dma.vmem_to_hbm [thread:$0]  %s1415, 1024, %s1413, [#allocation5], 128, 128, 8
        $region64: #{tpu_custom_call.1} parent=35 // pred_fallthru
          _
        // Predicated region
        $region65: #{tpu_custom_call.1} parent=35 // pred_check
          %p1421 = pneg %p157
        $region66: #{tpu_custom_call.1} parent=35 // pred_check_branch
          %1423 = sbr.rel (%p1421) target = $region68
        $region67: #{tpu_custom_call.1} parent=35 // pred_region
          %1424 = dma.done [#allocation5], 1024
        $region68: #{tpu_custom_call.1} parent=35 // pred_fallthru
          _
      $region36: #{tpu_custom_call.1} parent=5 // pred_fallthru
        _
      %p1425 = scmp.le.s32.totalorder 2, %s18
      // Predicated region
      $region69: #{tpu_custom_call.1} parent=5 // pred_check
        %p1426 = pneg %p1425
      $region70: #{tpu_custom_call.1} parent=5 // pred_check_branch
        %1428 = sbr.rel (%p1426) target = $region72
      $region71: #{tpu_custom_call.1} parent=5 // pred_region
        %s1429 = ssub.s32 %s18, 2
      $region72: #{tpu_custom_call.1} parent=5 // pred_fallthru
        _
    $region6: #{tpu_custom_call.1} parent=1 // loop_footer
      %s22 = sadd.s32 1, %s18
    $region7: #{tpu_custom_call.1} parent=1 // loop_footer_branch
      %17 = sbr.rel target = $region3
    $region8: #{tpu_custom_call.1} parent=1 // loop_exit
      _
    %1430 = vsyncpa [#allocation4], 1
    %s1431 = scalar_lea.sflag [#allocation4], 1
    %1432 = vsyncpa %s1431, 1
    %1433 = vsyncpa [#allocation7], 1
    %s1434 = scalar_lea.sflag [#allocation7], 1
    %1435 = vsyncpa %s1434, 1
    %1436 = vsyncpa [#allocation10], 1
    %s1437 = scalar_lea.sflag [#allocation10], 1
    %1438 = vsyncpa %s1437, 1
    %1439 = vsyncpa [#allocation5], 1
    %s1440 = scalar_lea.sflag [#allocation5], 1
    %1441 = vsyncpa %s1440, 1

</llo_original>
